<compile_context>
chip_gen: v6e
topology: v6e:2x2x1
jax: 0.10.0
libtpu: 0.0.40
codegen_flags: <defaults>
</compile_context>

<pallas_src>
import functools
import math

import jax
import jax.numpy as jnp
from jax.experimental import pallas as pl
from jax.experimental.pallas import tpu as pltpu


def _round_up(v, m):
    return ((v + m - 1) // m) * m


def _block_target_bytes():
    """Per-block byte target, generation-aware (smaller on v7x's 64 MiB VMEM)."""
    try:
        info = pltpu.get_tpu_info()
        vmem = int(getattr(info, "vmem_capacity_bytes", 0)) or (128 << 20)
    except Exception:
        vmem = 128 << 20
    return int(min(4 << 20, max(1 << 20, vmem // 32)))


def _vmem_limit_bytes(per_step_bytes):
    """Explicit scoped-VMEM limit: double-buffered blocks + temporaries; never
    below the stock defaults, never near v7x's 64 MiB physical ceiling."""
    est = 2 * int(per_step_bytes) + (8 << 20)
    return int(min(48 << 20, max(32 << 20, est)))


def _use_native_lowp(dtype):
    """Run the apply pass natively in bf16/fp16 only where the VPU supports it
    (v6e / v7x); v5e and older keep the f32 up-cast path."""
    if jnp.dtype(dtype) == jnp.dtype(jnp.float32):
        return False
    try:
        kind = jax.devices()[0].device_kind.lower()
    except Exception:
        return False
    return any(tag in kind for tag in ("v6", "v7", "7x"))


# ---------------------------------------------------------------------------
# Pass 1: per-(sample, channel) statistics, H*W tiled as a reduction axis.
# ---------------------------------------------------------------------------
def _stats_kernel(x_ref, stat_ref, s_acc, ss_acc, *, eps, hw, hw_tile):
    """Grid (row_tiles, hw_chunks).  Streaming sum / sum-of-squares per row."""
    j = pl.program_id(1)

    @pl.when(j == 0)
    def _init():
        s_acc[...] = jnp.zeros_like(s_acc)
        ss_acc[...] = jnp.zeros_like(ss_acc)

    x = x_ref[...].astype(jnp.float32)
    if hw % hw_tile != 0:                       # mask the ragged last chunk
        lane = jax.lax.broadcasted_iota(jnp.int32, x.shape, 1)
        x = jnp.where(j * hw_tile + lane < hw, x, 0.0)
    s_acc[...] += jnp.sum(x, axis=-1, keepdims=True)
    ss_acc[...] += jnp.sum(x * x, axis=-1, keepdims=True)

    @pl.when(j == pl.num_programs(1) - 1)
    def _finalize():
        mean = s_acc[...] * (1.0 / hw)
        denom = max(hw - 1, 1)     # torch.var(unbiased) is NaN at H*W==1; clamp
        var = (ss_acc[...] - hw * (mean * mean)) * (1.0 / denom)
        var = jnp.maximum(var, 0.0)   # one-pass sum-sq can cancel slightly < 0
        stat_ref[...] = jnp.concatenate([mean, jnp.sqrt(var + eps)], axis=-1)


def _mixstyle_stats_pallas(x2, eps):
    """x2: (R, HW) native dtype -> packed stats (R, 2) f32: [mu, sigma]."""
    R, HW = x2.shape
    itemsize = x2.dtype.itemsize
    target = _block_target_bytes()
    # Reduction chunk on the lane axis: multiple of 128 (or the full sub-128
    # extent) so per-step VMEM stays bounded regardless of the spatial size.
    hw_tile = HW if HW <= 128 else min(_round_up(HW, 128), 2048)
    rows = max(1, target // (hw_tile * itemsize))
    r_tile = R if R <= 8 else min(R, max(8, (rows // 8) * 8))
    grid = (pl.cdiv(R, r_tile), pl.cdiv(HW, hw_tile))
    per_step = r_tile * hw_tile * (itemsize + 4) + 4 * r_tile * 4
    kernel = functools.partial(_stats_kernel, eps=float(eps), hw=HW,
                               hw_tile=hw_tile)
    return pl.pallas_call(
        kernel,
        out_shape=jax.ShapeDtypeStruct((R, 2), jnp.float32),
        grid_spec=pltpu.PrefetchScalarGridSpec(
            num_scalar_prefetch=0,
            grid=grid,
            in_specs=[pl.BlockSpec((r_tile, hw_tile), lambda i, j: (i, j))],
            out_specs=pl.BlockSpec((r_tile, 2), lambda i, j: (i, 0)),
            scratch_shapes=[pltpu.VMEM((r_tile, 1), jnp.float32),
                            pltpu.VMEM((r_tile, 1), jnp.float32)]),
        compiler_params=pltpu.CompilerParams(
            dimension_semantics=("parallel", "arbitrary"),
            vmem_limit_bytes=_vmem_limit_bytes(per_step)),
    )(x2)


# ---------------------------------------------------------------------------
# Pass 2: elementwise affine out = (x - mu) * scale + mu_mix.
# ---------------------------------------------------------------------------
def _apply_kernel(x_ref, prm_ref, o_ref, *, f32_compute):
    """Per-row params packed as (r_tile, 3) f32 = [mu, scale, mu_mix]."""
    prm = prm_ref[...]
    mu, scale, mu_mix = prm[:, 0:1], prm[:, 1:2], prm[:, 2:3]
    if f32_compute:
        x = x_ref[...].astype(jnp.float32)
        o_ref[...] = ((x - mu) * scale + mu_mix).astype(o_ref.dtype)
    else:
        # Native low-precision multiply-add (v6e+): keeps pass 2 on the HBM
        # roofline at v7x bandwidth.  (x - mu)*scale + mu_mix form avoids the
        # shift-cancellation issue of the fused x*scale + shift form.
        dt = o_ref.dtype
        o_ref[...] = ((x_ref[...] - mu.astype(dt)) * scale.astype(dt)
                      + mu_mix.astype(dt))


def _apply_fold_kernel(x_ref, mu_ref, sc_ref, mm_ref, e_ref, o_ref):
    """Lane-folded variant: k original rows share one lane-dense folded row.
    Per-row params (r_tile, k) are expanded to (r_tile, l_tile) with a tiny
    one-hot matmul on the otherwise-idle MXU (E[j, l] == 1 iff l // HW == j)."""
    e = e_ref[...]                              # (k, l_tile) f32
    mu = jnp.dot(mu_ref[...], e, preferred_element_type=jnp.float32)
    sc = jnp.dot(sc_ref[...], e, preferred_element_type=jnp.float32)
    mm = jnp.dot(mm_ref[...], e, preferred_element_type=jnp.float32)
    x = x_ref[...].astype(jnp.float32)
    o_ref[...] = ((x - mu) * sc + mm).astype(o_ref.dtype)


def _choose_apply_tiles(R, HW, itemsize, target_bytes):
    # Lane tile: multiple of 128 (unmasked stores) or the full sub-128 extent.
    if HW < 128:
        l_tile = HW
    else:
        max_lanes = max(128, ((target_bytes // max(1, 8 * itemsize)) // 128) * 128)
        l_tile = min(_round_up(HW, 128), max_lanes, 4096)
    rows = max(1, target_bytes // (l_tile * itemsize))
    r_tile = R if R <= 8 else min(R, max(8, (rows // 8) * 8))
    # v7x megacore: keep >= 2 grid steps so both TensorCores get work
    # (prefer splitting rows, then lanes).  No effect on v5e/v6e (1 TC).
    if pl.cdiv(R, r_tile) * pl.cdiv(HW, l_tile) < 2:
        if R >= 16:
            r_tile = max(8, _round_up(pl.cdiv(R, 2), 8))
        elif HW >= 256:
            l_tile = max(128, _round_up(pl.cdiv(HW, 2), 128))
    return r_tile, l_tile


def _fold_factor(R, HW):
    """Rows folded onto the lane axis so stores stay 128-lane-dense."""
    if HW % 128 == 0 or HW >= 1024:
        return 1                      # already dense / tail is a small fraction
    k = 128 // math.gcd(HW, 128)
    return k if (k > 1 and R % k == 0) else 1


def _mixstyle_apply_pallas(x2, mu, scale, mu_mix):
    """x2: (R, HW) native dtype; mu/scale/mu_mix: (R,) f32 -> (R, HW)."""
    R, HW = x2.shape
    itemsize = x2.dtype.itemsize
    target = _block_target_bytes()
    dims = ("parallel", "parallel")
    # NOTE: pipeline_mode=pl.Buffered(3) on the x/out specs is a cheap knob if
    # profiling shows exposed DMA on many short lane steps (VMEM permitting).

    k = _fold_factor(R, HW)
    if k > 1:
        rg, lg = R // k, k * HW
        xf = x2.reshape(rg, lg)                               # contiguous view
        e = jnp.repeat(jnp.eye(k, dtype=jnp.float32), HW, axis=1)   # (k, k*HW)
        r_tile, l_tile = _choose_apply_tiles(rg, lg, itemsize, target)
        grid = (pl.cdiv(rg, r_tile), pl.cdiv(lg, l_tile))
        per_step = (2 * r_tile * l_tile * itemsize + r_tile * l_tile * 4
                    + k * l_tile * 4 + 3 * r_tile * k * 4)
        out = pl.pallas_call(
            _apply_fold_kernel,
            out_shape=jax.ShapeDtypeStruct((rg, lg), x2.dtype),
            grid_spec=pltpu.PrefetchScalarGridSpec(
                num_scalar_prefetch=0,
                grid=grid,
                in_specs=[pl.BlockSpec((r_tile, l_tile), lambda i, j: (i, j)),
                          pl.BlockSpec((r_tile, k), lambda i, j: (i, 0)),
                          pl.BlockSpec((r_tile, k), lambda i, j: (i, 0)),
                          pl.BlockSpec((r_tile, k), lambda i, j: (i, 0)),
                          pl.BlockSpec((k, l_tile), lambda i, j: (0, j))],
                out_specs=pl.BlockSpec((r_tile, l_tile), lambda i, j: (i, j))),
            compiler_params=pltpu.CompilerParams(
                dimension_semantics=dims,
                vmem_limit_bytes=_vmem_limit_bytes(per_step)),
        )(xf, mu.reshape(rg, k), scale.reshape(rg, k), mu_mix.reshape(rg, k), e)
        return out.reshape(R, HW)

    prm = jnp.stack([mu, scale, mu_mix], axis=1)              # (R, 3) f32
    f32_compute = not _use_native_lowp(x2.dtype)
    r_tile, l_tile = _choose_apply_tiles(R, HW, itemsize, target)
    grid = (pl.cdiv(R, r_tile), pl.cdiv(HW, l_tile))
    per_step = 2 * r_tile * l_tile * itemsize + r_tile * l_tile * 4 + r_tile * 3 * 4
    return pl.pallas_call(
        functools.partial(_apply_kernel, f32_compute=f32_compute),
        out_shape=jax.ShapeDtypeStruct((R, HW), x2.dtype),
        grid_spec=pltpu.PrefetchScalarGridSpec(
            num_scalar_prefetch=0,
            grid=grid,
            in_specs=[pl.BlockSpec((r_tile, l_tile), lambda i, j: (i, j)),
                      pl.BlockSpec((r_tile, 3), lambda i, j: (i, 0))],
            out_specs=pl.BlockSpec((r_tile, l_tile), lambda i, j: (i, j))),
        compiler_params=pltpu.CompilerParams(
            dimension_semantics=dims,
            vmem_limit_bytes=_vmem_limit_bytes(per_step)),
    )(x2, prm)


# ---------------------------------------------------------------------------
# Randomness glue (traced, jit-safe) + forward wrapper.
# ---------------------------------------------------------------------------
def _draw_mix_randomness(key, B, *, p, alpha, mix):
    """Traced draws matching MixStyle's randomness structure."""
    key_p, key_beta, key_perm, key_pa, key_pb = jax.random.split(key, 5)
    gate = jax.random.uniform(key_p) <= p                 # apply iff rand <= p
    lmda = jax.random.beta(key_beta, alpha, alpha, shape=(B,)).astype(jnp.float32)
    if mix == "random":
        perm = jax.random.permutation(key_perm, B)
    elif mix == "crossdomain":
        # Assumes the batch is ordered [domain A | domain B] with even B,
        # matching the original module's assumption.
        perm = jnp.arange(B - 1, -1, -1)
        perm_b, perm_a = perm[: B // 2], perm[B // 2:]
        perm_b = perm_b[jax.random.permutation(key_pb, B // 2)]
        perm_a = perm_a[jax.random.permutation(key_pa, B // 2)]
        perm = jnp.concatenate([perm_b, perm_a], axis=0)
    else:
        raise NotImplementedError(mix)
    return gate, perm.astype(jnp.int32), lmda


@functools.partial(jax.jit, static_argnames=("p", "alpha", "eps", "mix"))
def _mixstyle_train(x, key, *, p, alpha, eps, mix):
    B, C, H, W = x.shape
    R, HW = B * C, H * W
    gate, perm, lmda = _draw_mix_randomness(key, B, p=p, alpha=alpha, mix=mix)
    # TODO(synk): optional fused single-kernel path (x resident in VMEM, stats
    # into scratch, permuted affine in the same call) would cut HBM traffic to
    # 1 read + 1 write for small activations; not implemented here.

    def _mixed(xx):
        x2 = xx.reshape(R, HW)
        stats = _mixstyle_stats_pallas(x2, eps)            # (R, 2) f32
        mu = jax.lax.stop_gradient(stats[:, 0]).reshape(B, C)   # .detach()
        sig = jax.lax.stop_gradient(stats[:, 1]).reshape(B, C)
        l = lmda[:, None]                                   # (B, 1)
        mu_mix = mu * l + mu[perm] * (1.0 - l)
        sig_mix = sig * l + sig[perm] * (1.0 - l)
        scale = sig_mix / sig            # O(B*C) glue; no full-tile divide
        out2 = _mixstyle_apply_pallas(x2, mu.reshape(R), scale.reshape(R),
                                      mu_mix.reshape(R))
        return out2.reshape(B, C, H, W)

    # p-gate as a traced cond: jit-safe, no host sync, exact identity when off.
    return jax.lax.cond(gate, _mixed, lambda t: t, x)


def mixstyle_forward(x, domains, key, *, p=0.5, alpha=0.1, eps=1e-6,
                     mix="random", training=True, activated=True,
                     store_feats=False):
    """MixStyle forward.  x: (B, C, H, W), any float dtype.  Same shape/dtype out."""
    # TODO(synk): store_feats / domain_list / plot_style are host-side logging
    # in the original module and are not reproduced here (`domains` unused).
    del domains, store_feats
    if not training or not activated:
        return x
    return _mixstyle_train(x, key, p=float(p), alpha=float(alpha),
                           eps=float(eps), mix=str(mix))


# ---------------------------------------------------------------------------
# Pure-JAX reference (mirrors the PyTorch math) for correctness checking.
# ---------------------------------------------------------------------------
def _mixstyle_reference(x, perm, lmda, eps):
    x = x.astype(jnp.float32)
    mu = x.mean(axis=(2, 3), keepdims=True)
    var = x.var(axis=(2, 3), keepdims=True, ddof=1)
    sig = jnp.sqrt(var + eps)
    x_normed = (x - mu) / sig
    l = lmda.reshape(-1, 1, 1, 1)
    mu_mix = mu * l + mu[perm] * (1.0 - l)
    sig_mix = sig * l + sig[perm] * (1.0 - l)
    return x_normed * sig_mix + mu_mix


if __name__ == "__main__":
    root = jax.random.PRNGKey(0)
    k_x1, k_x2, k_x3, k_xb, k_m1, k_m2, k_m3, k_mb = jax.random.split(root, 8)

    def _check(x, mix_key, atol, rtol):
        B = x.shape[0]
        domains = jnp.zeros((B,), jnp.int32)
        out = mixstyle_forward(x, domains, mix_key, p=1.0, alpha=0.1,
                               eps=1e-6, mix="random", training=True)
        out = jax.block_until_ready(out)
        assert out.shape == x.shape and out.dtype == x.dtype
        gate, perm, lmda = _draw_mix_randomness(mix_key, B, p=1.0, alpha=0.1,
                                                mix="random")
        assert bool(gate)
        ref = _mixstyle_reference(x, perm, lmda, 1e-6)
        err = float(jnp.max(jnp.abs(out.astype(jnp.float32) - ref)))
        assert jnp.allclose(out.astype(jnp.float32), ref,
                            atol=atol, rtol=rtol), err

    # Main case (typical feature-map usage of the module).
    x1 = jax.random.normal(k_x1, (2, 4, 16, 16), jnp.float32) * 2.0 + 0.5
    _check(x1, k_m1, 1e-4, 1e-4)

    # Larger spatial extent: exercises the chunked H*W reduction (ragged tail).
    x2 = jax.random.normal(k_x2, (2, 4, 48, 64), jnp.float32) * 1.5 - 0.3
    _check(x2, k_m2, 1e-3, 1e-3)

    # Small, non-128-aligned spatial extent: exercises the lane-folded apply.
    x3 = jax.random.normal(k_x3, (2, 8, 4, 4), jnp.float32) * 0.7 + 1.2
    _check(x3, k_m3, 1e-4, 1e-4)

    # bf16 activations (native low-precision apply on v6e+/v7x, f32 elsewhere).
    xb = (jax.random.normal(k_xb, (2, 4, 16, 16), jnp.float32) * 2.0
          + 0.5).astype(jnp.bfloat16)
    _check(xb, k_mb, 1.5e-1, 5e-2)

    print("KERNEL_OK")
</pallas_src>

<mosaic_0001>
module attributes {stable_mosaic.version = 11 : i64} {
  func.func @_stats_kernel(%arg0: i32, %arg1: i32, %arg2: memref<8x256xf32, #tpu.memory_space<vmem>>, %arg3: memref<8x2xf32, #tpu.memory_space<vmem>>, %arg4: memref<8x1xf32, #tpu.memory_space<vmem>>, %arg5: memref<8x1xf32, #tpu.memory_space<vmem>>) attributes {dimension_semantics = [#tpu.dimension_semantics<parallel>, #tpu.dimension_semantics<arbitrary>], iteration_bounds = array<i64: 1, 1>, scalar_prefetch = 0 : i64, scratch_operands = 2 : i64, tpu.core_type = #tpu.core_type<tc>, window_params = [{transform_indices = @transform_0, window_bounds = array<i64: 8, 256>}, {transform_indices = @transform_1, window_bounds = array<i64: 8, 2>}]} {
    %c0_i32 = arith.constant 0 : i32
    %0 = arith.cmpi eq, %arg1, %c0_i32 : i32
    %1 = arith.extui %0 : i1 to i32
    %c0_i32_0 = arith.constant 0 : i32
    %2 = arith.cmpi ne, %1, %c0_i32_0 : i32
    scf.if %2 {
      %cst_13 = arith.constant 0.000000e+00 : f32
      %18 = vector.broadcast %cst_13 : f32 to vector<8x1xf32>
      %c0_14 = arith.constant 0 : index
      %c0_15 = arith.constant 0 : index
      %19 = vector.load %arg4[%c0_14, %c0_15] : memref<8x1xf32, #tpu.memory_space<vmem>>, vector<8x1xf32>
      tpu.vector_store %arg4[%c0_14, %c0_15], %18 {strides = array<i32>} : memref<8x1xf32, #tpu.memory_space<vmem>>, vector<8x1xf32>,
      %cst_16 = arith.constant 0.000000e+00 : f32
      %20 = vector.broadcast %cst_16 : f32 to vector<8x1xf32>
      %c0_17 = arith.constant 0 : index
      %c0_18 = arith.constant 0 : index
      %21 = vector.load %arg5[%c0_17, %c0_18] : memref<8x1xf32, #tpu.memory_space<vmem>>, vector<8x1xf32>
      tpu.vector_store %arg5[%c0_17, %c0_18], %20 {strides = array<i32>} : memref<8x1xf32, #tpu.memory_space<vmem>>, vector<8x1xf32>,
    } else {
    }
    %c0 = arith.constant 0 : index
    %c0_1 = arith.constant 0 : index
    %3 = vector.load %arg2[%c0, %c0_1] : memref<8x256xf32, #tpu.memory_space<vmem>>, vector<8x256xf32>
    %c0_2 = arith.constant 0 : index
    %c0_3 = arith.constant 0 : index
    %4 = vector.load %arg4[%c0_2, %c0_3] : memref<8x1xf32, #tpu.memory_space<vmem>>, vector<8x1xf32>
    %cst = arith.constant dense<0.000000e+00> : vector<8xf32>
    %5 = vector.multi_reduction <add>, %3, %cst [1] : vector<8x256xf32> to vector<8xf32>
    %6 = vector.shape_cast %5 : vector<8xf32> to vector<8x1xf32>
    %7 = arith.addf %4, %6 : vector<8x1xf32>
    %c0_4 = arith.constant 0 : index
    %c0_5 = arith.constant 0 : index
    %8 = vector.load %arg4[%c0_4, %c0_5] : memref<8x1xf32, #tpu.memory_space<vmem>>, vector<8x1xf32>
    tpu.vector_store %arg4[%c0_4, %c0_5], %7 {strides = array<i32>} : memref<8x1xf32, #tpu.memory_space<vmem>>, vector<8x1xf32>,
    %c0_6 = arith.constant 0 : index
    %c0_7 = arith.constant 0 : index
    %9 = vector.load %arg5[%c0_6, %c0_7] : memref<8x1xf32, #tpu.memory_space<vmem>>, vector<8x1xf32>
    %10 = arith.mulf %3, %3 : vector<8x256xf32>
    %cst_8 = arith.constant dense<0.000000e+00> : vector<8xf32>
    %11 = vector.multi_reduction <add>, %10, %cst_8 [1] : vector<8x256xf32> to vector<8xf32>
    %12 = vector.shape_cast %11 : vector<8xf32> to vector<8x1xf32>
    %13 = arith.addf %9, %12 : vector<8x1xf32>
    %c0_9 = arith.constant 0 : index
    %c0_10 = arith.constant 0 : index
    %14 = vector.load %arg5[%c0_9, %c0_10] : memref<8x1xf32, #tpu.memory_space<vmem>>, vector<8x1xf32>
    tpu.vector_store %arg5[%c0_9, %c0_10], %13 {strides = array<i32>} : memref<8x1xf32, #tpu.memory_space<vmem>>, vector<8x1xf32>,
    %c0_i32_11 = arith.constant 0 : i32
    %15 = arith.cmpi eq, %arg1, %c0_i32_11 : i32
    %16 = arith.extui %15 : i1 to i32
    %c0_i32_12 = arith.constant 0 : i32
    %17 = arith.cmpi ne, %16, %c0_i32_12 : i32
    scf.if %17 {
      %c0_13 = arith.constant 0 : index
      %c0_14 = arith.constant 0 : index
      %18 = vector.load %arg4[%c0_13, %c0_14] : memref<8x1xf32, #tpu.memory_space<vmem>>, vector<8x1xf32>
      %cst_15 = arith.constant 3.906250e-03 : f32
      %19 = vector.broadcast %cst_15 : f32 to vector<8x1xf32>
      %20 = arith.mulf %18, %19 : vector<8x1xf32>
      %c0_16 = arith.constant 0 : index
      %c0_17 = arith.constant 0 : index
      %21 = vector.load %arg5[%c0_16, %c0_17] : memref<8x1xf32, #tpu.memory_space<vmem>>, vector<8x1xf32>
      %22 = arith.mulf %20, %20 : vector<8x1xf32>
      %cst_18 = arith.constant 2.560000e+02 : f32
      %23 = vector.broadcast %cst_18 : f32 to vector<8x1xf32>
      %24 = arith.mulf %23, %22 : vector<8x1xf32>
      %25 = arith.subf %21, %24 : vector<8x1xf32>
      %cst_19 = arith.constant 0.00392156886 : f32
      %26 = vector.broadcast %cst_19 : f32 to vector<8x1xf32>
      %27 = arith.mulf %25, %26 : vector<8x1xf32>
      %cst_20 = arith.constant 0.000000e+00 : f32
      %28 = vector.broadcast %cst_20 : f32 to vector<8x1xf32>
      %29 = arith.maximumf %27, %28 : vector<8x1xf32>
      %cst_21 = arith.constant 9.99999997E-7 : f32
      %30 = vector.broadcast %cst_21 : f32 to vector<8x1xf32>
      %31 = arith.addf %29, %30 : vector<8x1xf32>
      %32 = math.sqrt %31 : vector<8x1xf32>
      %33 = tpu.concatenate %20, %32 in 1 : vector<8x1xf32>, vector<8x1xf32> -> vector<8x2xf32>
      %c0_22 = arith.constant 0 : index
      %c0_23 = arith.constant 0 : index
      %34 = vector.load %arg3[%c0_22, %c0_23] : memref<8x2xf32, #tpu.memory_space<vmem>>, vector<8x2xf32>
      tpu.vector_store %arg3[%c0_22, %c0_23], %33 {strides = array<i32>} : memref<8x2xf32, #tpu.memory_space<vmem>>, vector<8x2xf32>,
    } else {
    }
    return
  }
  func.func @transform_0(%arg0: i32, %arg1: i32) -> (i32, i32) {
    %c0_i32 = arith.constant 0 : i32
    return %arg0, %arg1 : i32, i32
  }
  func.func @transform_1(%arg0: i32, %arg1: i32) -> (i32, i32) {
    %c0_i32 = arith.constant 0 : i32
    %c0_i32_0 = arith.constant 0 : i32
    return %arg0, %c0_i32 : i32, i32
  }
}

module attributes {stable_mosaic.version = 11 : i64} {
  func.func @_apply_kernel(%arg0: i32, %arg1: i32, %arg2: memref<8x128xf32, #tpu.memory_space<vmem>>, %arg3: memref<8x3xf32, #tpu.memory_space<vmem>>, %arg4: memref<8x128xf32, #tpu.memory_space<vmem>>) attributes {dimension_semantics = [#tpu.dimension_semantics<parallel>, #tpu.dimension_semantics<parallel>], iteration_bounds = array<i64: 1, 2>, scalar_prefetch = 0 : i64, scratch_operands = 0 : i64, tpu.core_type = #tpu.core_type<tc>, window_params = [{transform_indices = @transform_0, window_bounds = array<i64: 8, 128>}, {transform_indices = @transform_1, window_bounds = array<i64: 8, 3>}, {transform_indices = @transform_2, window_bounds = array<i64: 8, 128>}]} {
    %c0 = arith.constant 0 : index
    %c0_0 = arith.constant 0 : index
    %0 = vector.load %arg3[%c0, %c0_0] : memref<8x3xf32, #tpu.memory_space<vmem>>, vector<8x3xf32>
    %1 = vector.extract_strided_slice %0 {offsets = [0, 0], sizes = [8, 1], strides = [1, 1]} : vector<8x3xf32> to vector<8x1xf32>
    %2 = vector.extract_strided_slice %0 {offsets = [0, 1], sizes = [8, 1], strides = [1, 1]} : vector<8x3xf32> to vector<8x1xf32>
    %3 = vector.extract_strided_slice %0 {offsets = [0, 2], sizes = [8, 1], strides = [1, 1]} : vector<8x3xf32> to vector<8x1xf32>
    %c0_1 = arith.constant 0 : index
    %c0_2 = arith.constant 0 : index
    %4 = vector.load %arg2[%c0_1, %c0_2] : memref<8x128xf32, #tpu.memory_space<vmem>>, vector<8x128xf32>
    %5 = vector.broadcast %1 : vector<8x1xf32> to vector<8x128xf32>
    %6 = arith.subf %4, %5 : vector<8x128xf32>
    %7 = vector.broadcast %2 : vector<8x1xf32> to vector<8x128xf32>
    %8 = arith.mulf %6, %7 : vector<8x128xf32>
    %9 = vector.broadcast %3 : vector<8x1xf32> to vector<8x128xf32>
    %10 = arith.addf %8, %9 : vector<8x128xf32>
    %c0_3 = arith.constant 0 : index
    %c0_4 = arith.constant 0 : index
    %11 = vector.load %arg4[%c0_3, %c0_4] : memref<8x128xf32, #tpu.memory_space<vmem>>, vector<8x128xf32>
    tpu.vector_store %arg4[%c0_3, %c0_4], %10 {strides = array<i32>} : memref<8x128xf32, #tpu.memory_space<vmem>>, vector<8x128xf32>,
    return
  }
  func.func @transform_0(%arg0: i32, %arg1: i32) -> (i32, i32) {
    %c0_i32 = arith.constant 0 : i32
    return %arg0, %arg1 : i32, i32
  }
  func.func @transform_1(%arg0: i32, %arg1: i32) -> (i32, i32) {
    %c0_i32 = arith.constant 0 : i32
    %c0_i32_0 = arith.constant 0 : i32
    return %arg0, %c0_i32 : i32, i32
  }
  func.func @transform_2(%arg0: i32, %arg1: i32) -> (i32, i32) {
    %c0_i32 = arith.constant 0 : i32
    return %arg0, %arg1 : i32, i32
  }
}

</mosaic_0001>

<llo_original>
// kernel: squeeze.48
$region0: #{squeeze.48}
  %s0 = inlined_call_operand.vmem [shape: f32[8], index: 0, kind: input, shape index: {}]
  %s1 = inlined_call_operand.vmem [shape: f32[2,4], index: 1, kind: output, shape index: {}]
  $region1: #{squeeze.48} parent=0
    #allocation0 [shape = 'u8[4096]{0}', space=vmem, size = 0x1000, scoped, tag = 'scoped mem for output reshape']
    #allocation1 [shape = 'u8[4096]{0}', space=vmem, size = 0x1000, scoped, tag = 'scoped mem for input reshape']
    %s3 = sshll.u32 1, 1
    %s4 = ssub.s32 %s3, 1
    %v5 = vld [vmem:[%s0] sm:%s4]
    %6 = vst [vmem:[#allocation1] sm:%s4] %v5
    %v7 = vld [vmem:[#allocation1] sm:$0x1]
    %vm8 = vcmask 31744
    %9 = vst.msk [vmem:[#allocation0] sm:$0x1] %vm8, %v7
    %v10 = vld [vmem:[#allocation1] sm:$0x1]
    %11 = vrot.lane.b32.xlu0 %v10, 124
    %v12 = vpop.permute.xlu0 %11
    %vm13 = vcmask 31744
    %s14 = scalar_lea.vmem [#allocation0], 1
    %15 = vst.msk [vmem:[%s14] sm:$0x1] %vm13, %v12
    %s17 = sshll.u32 1, 2
    %s18 = ssub.s32 %s17, 1
    %v20 = vld [vmem:[#allocation0] sm:%s18]
    %s21 = sshll.u32 1, 2
    %s22 = ssub.s32 %s21, 1
    %23 = vst [vmem:[%s1] sm:%s22] %v20

// kernel: branch_1_fun.3
$region0: #{branch_1_fun.3}
  #allocation0 [shape = 'u32[]', space=smem, size = 0x4, offset = 0x4, fixed_abs, tag = 'smem constant byte address 0x4 - core index']
  #allocation1 [shape = 'u32[144,128]{1,0:T(1,128)}', space=vmem, size = 0x12000, scoped, tag = 'internal scratch']
  %s0 = inlined_call_operand.vmem [shape: f32[8,256], index: 0, kind: input, shape index: {}]
  %s1 = inlined_call_operand.vmem [shape: f32[8,3], index: 1, kind: input, shape index: {}]
  %s2 = inlined_call_operand.vmem [shape: f32[8,256], index: 2, kind: output, shape index: {}]
  %s3 = sld [smem:[#allocation0]]
  $region41: #{branch_1_fun.3} parent=0
    _
  %s5 = ssub.s32 1, %s3
  %s6 = scalar_select 0, %s5, %s3
  loop: start=0, step=1, limit=4
  $region2: #{branch_1_fun.3} parent=0 // loop_pre_header
    _
  $region3: #{branch_1_fun.3} parent=0 // loop_header
    %s8 = sphi 0, %s12
    %p9 = scmp.ge.s32.totalorder %s8, 4
    %s15 = sphi 0, %s27
    %s16 = sphi 0, %s23
    %s17 = sphi 0, %s15
    %s18 = sphi 0, %s16
    %s19 = sphi 0, %s17
    %s20 = sphi 0, %s18
    %s32 = sphi 0, %s34
    %s35 = sphi 0, %s32
    %s36 = sphi 0, %s35
    %s52 = sphi 0, %s36
    %s58 = sphi 0, %s60
    %s61 = sphi 0, %s58
    %s62 = sphi 0, %s61
    %s78 = sphi 0, %s62
    %s86 = sphi 0, %s88
    %s89 = sphi 0, %s86
    %s90 = sphi 0, %s89
    %s106 = sphi 0, %s90
  $region4: #{branch_1_fun.3} parent=0 // loop_header_branch
    %11 = sbr.rel (%p9) target = $region8
  $region5: #{branch_1_fun.3} parent=0 // loop_body
    %s13 = ssub.s32 %s8, 1
    %s14 = ssub.s32 %s8, 2
    %s21 = sadd.s32 1, %s16
    %p22 = scmp.ge.s32.totalorder %s21, 2
    %s23 = scalar_select %p22, 0, %s21
    %s24 = sadd.s32 1, %s15
    %s25 = scalar_select %p22, %s24, %s15
    %p26 = scmp.ge.s32.totalorder %s25, 1
    %s27 = scalar_select %p26, 0, %s25
    %s28 = ssub.s32 %s15, %s27
    %s29 = ssub.s32 %s16, %s23
    %s30 = sor.u32 %s28, %s29
    %p31 = scmp.eq.s32.totalorder %s30, 0
    %s33 = sadd.s32 %s32, 1
    %s34 = scalar_select %p31, %s32, %s33
    %p37 = pneg %p31
    %p38 = scmp.eq.s32.totalorder %s8, 1
    %p39 = por %p37, %p38
    %p40 = scmp.ne.s32.totalorder %s32, %s35
    %p41 = scmp.eq.s32.totalorder %s8, 0
    %p42 = por %p40, %p41
    %p43 = scmp.ne.s32.totalorder %s32, %s35
    %p44 = scmp.eq.s32.totalorder %s13, 1
    %p45 = por %p43, %p44
    %p46 = scmp.ne.s32.totalorder %s35, %s36
    %p47 = scmp.eq.s32.totalorder %s13, 0
    %p48 = por %p46, %p47
    %p49 = scmp.ne.s32.totalorder %s35, %s36
    %p50 = scmp.eq.s32.totalorder %s14, 1
    %p51 = por %p49, %p50
    %p53 = scmp.ne.s32.totalorder %s36, %s52
    %p54 = scmp.eq.s32.totalorder %s14, 0
    %p55 = por %p53, %p54
    %s56 = ssub.s32 %s15, %s27
    %p57 = scmp.eq.s32.totalorder %s56, 0
    %s59 = sadd.s32 %s58, 1
    %s60 = scalar_select %p57, %s58, %s59
    %p63 = pneg %p57
    %p64 = scmp.eq.s32.totalorder %s8, 1
    %p65 = por %p63, %p64
    %p66 = scmp.ne.s32.totalorder %s58, %s61
    %p67 = scmp.eq.s32.totalorder %s8, 0
    %p68 = por %p66, %p67
    %p69 = scmp.ne.s32.totalorder %s58, %s61
    %p70 = scmp.eq.s32.totalorder %s13, 1
    %p71 = por %p69, %p70
    %p72 = scmp.ne.s32.totalorder %s61, %s62
    %p73 = scmp.eq.s32.totalorder %s13, 0
    %p74 = por %p72, %p73
    %p75 = scmp.ne.s32.totalorder %s61, %s62
    %p76 = scmp.eq.s32.totalorder %s14, 1
    %p77 = por %p75, %p76
    %p79 = scmp.ne.s32.totalorder %s62, %s78
    %p80 = scmp.eq.s32.totalorder %s14, 0
    %p81 = por %p79, %p80
    %s82 = ssub.s32 %s15, %s27
    %s83 = ssub.s32 %s16, %s23
    %s84 = sor.u32 %s82, %s83
    %p85 = scmp.eq.s32.totalorder %s84, 0
    %s87 = sadd.s32 %s86, 1
    %s88 = scalar_select %p85, %s86, %s87
    %p91 = pneg %p85
    %p92 = scmp.eq.s32.totalorder %s8, 1
    %p93 = por %p91, %p92
    %p94 = scmp.ne.s32.totalorder %s86, %s89
    %p95 = scmp.eq.s32.totalorder %s8, 0
    %p96 = por %p94, %p95
    %p97 = scmp.ne.s32.totalorder %s86, %s89
    %p98 = scmp.eq.s32.totalorder %s13, 1
    %p99 = por %p97, %p98
    %p100 = scmp.ne.s32.totalorder %s89, %s90
    %p101 = scmp.eq.s32.totalorder %s13, 0
    %p102 = por %p100, %p101
    %p103 = scmp.ne.s32.totalorder %s89, %s90
    %p104 = scmp.eq.s32.totalorder %s14, 1
    %p105 = por %p103, %p104
    %p107 = scmp.ne.s32.totalorder %s90, %s106
    %p108 = scmp.eq.s32.totalorder %s14, 0
    %p109 = por %p107, %p108
    %p110 = scmp.le.s32.totalorder 1, %s8
    %p111 = scmp.lt.s32.totalorder %s8, 3
    %p112 = pnand %p110, %p111
    %p113 = pneg %p112
    // Predicated region
    $region9: #{branch_1_fun.3} parent=5 // pred_check
      _
    $region10: #{branch_1_fun.3} parent=5 // pred_check_branch
      %115 = sbr.rel (%p112) target = $region12
    $region11: #{branch_1_fun.3} parent=5 // pred_region
      %s116 = ssub.s32 %s8, 1
      // Predicated region
      $region13: #{branch_1_fun.3} parent=11 // pred_check
        %p117 = pneg %p74
      $region14: #{branch_1_fun.3} parent=11 // pred_check_branch
        %119 = sbr.rel (%p117) target = $region16
      $region15: #{branch_1_fun.3} parent=11 // pred_region
        %p120 = scmp.lt.s32.totalorder %s17, 0
        %s121 = scalar_select %p120, %s17, 0
        %s122 = smul.addr %s121, 8
        %s123 = scalar_lea.vmem %s1, %s122
      $region16: #{branch_1_fun.3} parent=11 // pred_fallthru
        _
    $region12: #{branch_1_fun.3} parent=5 // pred_fallthru
      _
    %p124 = scmp.lt.s32.totalorder %s8, 2
    // Predicated region
    $region17: #{branch_1_fun.3} parent=5 // pred_check
      %p125 = pneg %p124
    $region18: #{branch_1_fun.3} parent=5 // pred_check_branch
      %127 = sbr.rel (%p125) target = $region20
    $region19: #{branch_1_fun.3} parent=5 // pred_region
      // Predicated region
      $region21: #{branch_1_fun.3} parent=19 // pred_check
        %p128 = pneg %p42
      $region22: #{branch_1_fun.3} parent=19 // pred_check_branch
        %130 = sbr.rel (%p128) target = $region24
      $region23: #{branch_1_fun.3} parent=19 // pred_region
        %p131 = scmp.lt.s32.totalorder %s15, 0
        %s132 = scalar_select %p131, %s15, 0
        %p133 = scmp.lt.s32.totalorder %s16, 1
        %s134 = scalar_select %p133, %s16, 1
        %s135 = smul.addr %s132, 2
        %s136 = sadd.s32 %s134, %s135
        %s137 = smul.addr %s136, 8
        %s138 = scalar_lea.vmem %s0, %s137
      $region24: #{branch_1_fun.3} parent=19 // pred_fallthru
        _
    $region20: #{branch_1_fun.3} parent=5 // pred_fallthru
      _
    %p139 = scmp.le.s32.totalorder 1, %s8
    %p140 = scmp.lt.s32.totalorder %s8, 3
    %p141 = pnand %p139, %p140
    %p142 = pneg %p141
    // Predicated region
    $region25: #{branch_1_fun.3} parent=5 // pred_check
      _
    $region26: #{branch_1_fun.3} parent=5 // pred_check_branch
      %144 = sbr.rel (%p141) target = $region28
    $region27: #{branch_1_fun.3} parent=5 // pred_region
      %s145 = ssub.s32 %s8, 1
      %p146 = scmp.lt.s32.totalorder %s17, 0
      %s147 = scalar_select %p146, %s17, 0
      %p148 = scmp.lt.s32.totalorder %s18, 1
      %s149 = scalar_select %p148, %s18, 1
      %s150 = smul.addr %s147, 2
      %s151 = sadd.s32 %s149, %s150
      %s152 = smul.addr %s151, 8
      %s153 = scalar_lea.vmem %s0, %s152
      %p154 = pneg %p48
      %p155 = pneg %p45
      %p156 = scmp.lt.s32.totalorder %s17, 0
      %s157 = scalar_select %p156, %s17, 0
      %s158 = smul.addr %s157, 8
      %s159 = scalar_lea.vmem %s1, %s158
      %p160 = pneg %p74
      %p161 = pneg %p71
      %p162 = pneg %p102
      %p163 = pneg %p99
      %p164 = scmp.lt.s32.totalorder %s17, 0
      %s165 = scalar_select %p164, %s17, 0
      %p166 = scmp.lt.s32.totalorder %s18, 1
      %s167 = scalar_select %p166, %s18, 1
      %s168 = smul.addr %s165, 2
      %s169 = sadd.s32 %s167, %s168
      %s170 = smul.addr %s169, 8
      %s171 = scalar_lea.vmem %s2, %s170
      %p172 = scmp.lt.s32.totalorder %s17, 0
      %s173 = scalar_select %p172, %s17, 0
      %p174 = scmp.lt.s32.totalorder %s18, 1
      %s175 = scalar_select %p174, %s18, 1
      %s176 = smul.addr %s173, 2
      %s177 = sadd.s32 %s175, %s176
      %s178 = smul.addr %s177, 8
      %s179 = scalar_lea.vmem %s0, %s178
      %p180 = scmp.lt.s32.totalorder %s17, 0
      %s181 = scalar_select %p180, %s17, 0
      %s182 = smul.addr %s181, 8
      %s183 = scalar_lea.vmem %s1, %s182
      %p184 = scmp.lt.s32.totalorder %s17, 0
      %s185 = scalar_select %p184, %s17, 0
      %p186 = scmp.lt.s32.totalorder %s18, 1
      %s187 = scalar_select %p186, %s18, 1
      %s188 = smul.addr %s185, 2
      %s189 = sadd.s32 %s187, %s188
      %s190 = smul.addr %s189, 8
      %s191 = scalar_lea.vmem %s2, %s190
      %v192 = vld [vmem:[%s183] sm:$0xff]
      %v193 = vld [vmem:[%s179] sm:$0xff]
      %195 = vset.pattern.permute.xlu0 0
      %196 = vperm.xlu0 %195, %v192
      %v197 = vpop.permute.xlu0 %196
      %v199 = vsub.f32 %v193, %v197
      %200 = vset.pattern.permute.xlu0 1
      %201 = vperm.xlu0 %200, %v192
      %v202 = vpop.permute.xlu0 %201
      %v204 = vmul.f32 %v199, %v202
      %205 = vset.pattern.permute.xlu0 2
      %206 = vperm.xlu0 %205, %v192
      %v207 = vpop.permute.xlu0 %206
      %v209 = vadd.f32 %v204, %v207
      %210 = vst [vmem:[%s191] sm:$0xff] %v209
      %p211 = scmp.lt.s32.totalorder %s17, 0
      %s212 = scalar_select %p211, %s17, 0
      %p213 = scmp.lt.s32.totalorder %s18, 1
      %s214 = scalar_select %p213, %s18, 1
      %s215 = smul.addr %s212, 2
      %s216 = sadd.s32 %s214, %s215
      %s217 = smul.addr %s216, 8
      %s218 = scalar_lea.vmem %s2, %s217
      // Predicated region
      $region29: #{branch_1_fun.3} parent=27 // pred_check
        %p219 = pneg %p99
      $region30: #{branch_1_fun.3} parent=27 // pred_check_branch
        %221 = sbr.rel (%p219) target = $region32
      $region31: #{branch_1_fun.3} parent=27 // pred_region
        _
      $region32: #{branch_1_fun.3} parent=27 // pred_fallthru
        _
    $region28: #{branch_1_fun.3} parent=5 // pred_fallthru
      _
    %p222 = scmp.le.s32.totalorder 2, %s8
    // Predicated region
    $region33: #{branch_1_fun.3} parent=5 // pred_check
      %p223 = pneg %p222
    $region34: #{branch_1_fun.3} parent=5 // pred_check_branch
      %225 = sbr.rel (%p223) target = $region36
    $region35: #{branch_1_fun.3} parent=5 // pred_region
      %s226 = ssub.s32 %s8, 2
      // Predicated region
      $region37: #{branch_1_fun.3} parent=35 // pred_check
        %p227 = pneg %p105
      $region38: #{branch_1_fun.3} parent=35 // pred_check_branch
        %229 = sbr.rel (%p227) target = $region40
      $region39: #{branch_1_fun.3} parent=35 // pred_region
        %p230 = scmp.lt.s32.totalorder %s19, 0
        %s231 = scalar_select %p230, %s19, 0
        %p232 = scmp.lt.s32.totalorder %s20, 1
        %s233 = scalar_select %p232, %s20, 1
        %s234 = smul.addr %s231, 2
        %s235 = sadd.s32 %s233, %s234
        %s236 = smul.addr %s235, 8
        %s237 = scalar_lea.vmem %s2, %s236
      $region40: #{branch_1_fun.3} parent=35 // pred_fallthru
        _
    $region36: #{branch_1_fun.3} parent=5 // pred_fallthru
      _
  $region6: #{branch_1_fun.3} parent=0 // loop_footer
    %s12 = sadd.s32 1, %s8
  $region7: #{branch_1_fun.3} parent=0 // loop_footer_branch
    %7 = sbr.rel target = $region3
  $region8: #{branch_1_fun.3} parent=0 // loop_exit
    _

// kernel: branch_1_fun.2
$region0: #{branch_1_fun.2}
  #allocation0 [shape = 'u32[]', space=smem, size = 0x4, offset = 0x4, fixed_abs, tag = 'smem constant byte address 0x4 - core index']
  #allocation1 [shape = 'u32[144,128]{1,0:T(1,128)}', space=vmem, size = 0x12000, scoped, tag = 'internal scratch']
  #allocation2 [shape = 'f32[8,1]{1,0:T(8,128)}', space=vmem, size = 0x1000, scoped, tag = 'scratch operand']
  #allocation3 [shape = 'f32[8,1]{1,0:T(8,128)}', space=vmem, size = 0x1000, scoped, tag = 'scratch operand']
  %s0 = inlined_call_operand.vmem [shape: f32[8,256], index: 0, kind: input, shape index: {}]
  %s1 = inlined_call_operand.vmem [shape: f32[8,2], index: 1, kind: output, shape index: {}]
  %s2 = sld [smem:[#allocation0]]
  $region22: #{branch_1_fun.2} parent=0
    _
  %s4 = ssub.s32 1, %s2
  %s5 = scalar_select 0, %s4, %s2
  // Predicated region
  $region2: #{branch_1_fun.2} parent=0 // pred_check
    _
  $region3: #{branch_1_fun.2} parent=0 // pred_check_branch
    %7 = sbr.rel (0) target = $region5
  $region4: #{branch_1_fun.2} parent=0 // pred_region
    _
  $region5: #{branch_1_fun.2} parent=0 // pred_fallthru
    _
  %p8 = scmp.eq.s32.totalorder 0, 0
  // Predicated region
  $region6: #{branch_1_fun.2} parent=0 // pred_check
    %p9 = pneg %p8
  $region7: #{branch_1_fun.2} parent=0 // pred_check_branch
    %11 = sbr.rel (%p9) target = $region9
  $region8: #{branch_1_fun.2} parent=0 // pred_region
    %vm12 = vcmask 7168
    %13 = vst.msk [vmem:[#allocation2] sm:$0xff] %vm12, 0.0
    %14 = vst.msk [vmem:[#allocation3] sm:$0xff] %vm12, 0.0
  $region9: #{branch_1_fun.2} parent=0 // pred_fallthru
    _
  %v15 = vld [vmem:[%s0] sm:$0xff]
  %v16 = vld [vmem:[%s0 + $0x8] sm:$0xff]
  %v17 = vld [vmem:[#allocation2] sm:$0xff]
  %v18 = vadd.f32 %v15, %v16
  %19 = vadd.xlane.f32.xlu0 %v18
  %v20 = vpop.xlane.xlu0 %19
  %v21 = vadd.f32 %v17, %v20
  %vm22 = vcmask 7168
  %23 = vst.msk [vmem:[#allocation2] sm:$0xff] %vm22, %v21
  %v24 = vld [vmem:[#allocation3] sm:$0xff]
  %v25 = vmul.f32 %v15, %v15
  %v26 = vmul.f32 %v16, %v16
  %v27 = vadd.f32 %v25, %v26
  %28 = vadd.xlane.f32.xlu0 %v27
  %v29 = vpop.xlane.xlu0 %28
  %v30 = vadd.f32 %v24, %v29
  %31 = vst.msk [vmem:[#allocation3] sm:$0xff] %vm22, %v30
  // Predicated region
  $region10: #{branch_1_fun.2} parent=0 // pred_check
    %p32 = pneg %p8
  $region11: #{branch_1_fun.2} parent=0 // pred_check_branch
    %34 = sbr.rel (%p32) target = $region13
  $region12: #{branch_1_fun.2} parent=0 // pred_region
    %v35 = vld [vmem:[#allocation2] sm:$0xff]
    %v36 = vmul.f32 %v35, 0.00390625
    %v37 = vld [vmem:[#allocation3] sm:$0xff]
    %v38 = vmul.f32 %v36, %v36
    %v39 = vmul.f32 %v38, 256.0
    %v40 = vsub.f32 %v37, %v39
    %v41 = vmul.f32 %v40, 0.003921569
    %v42 = vmax.f32 %v41, 0.0
    %v43 = vadd.f32 %v42, 1e-06
    %v44 = vrsqrt.pop %v43
    %v45 = vmul.f32 %v43, %v44
    %vm46 = vcmp.eq.f32.partialorder %v43, inf
    %v47 = vsel %vm46, %v43, %v45
    %vm48 = vcmp.eq.f32.partialorder %v43, 0.0
    %v49 = vand.u32 %v43, 2147483648
    %v50 = vsel %vm48, %v49, %v47
    %52 = vrot.lane.b32.xlu0 %v50, 1
    %v53 = vpop.permute.xlu0 %52
    %v55 = vsel %vm22, %v36, %v53
    %vm56 = vcmask 15360
    %57 = vst.msk [vmem:[%s1] sm:$0xff] %vm56, %v55
  $region13: #{branch_1_fun.2} parent=0 // pred_fallthru
    _
  // Predicated region
  $region14: #{branch_1_fun.2} parent=0 // pred_check
    _
  $region15: #{branch_1_fun.2} parent=0 // pred_check_branch
    %59 = sbr.rel (0) target = $region17
  $region16: #{branch_1_fun.2} parent=0 // pred_region
    _
  $region17: #{branch_1_fun.2} parent=0 // pred_fallthru
    _
  // Predicated region
  $region18: #{branch_1_fun.2} parent=0 // pred_check
    _
  $region19: #{branch_1_fun.2} parent=0 // pred_check_branch
    %61 = sbr.rel (0) target = $region21
  $region20: #{branch_1_fun.2} parent=0 // pred_region
    _
  $region21: #{branch_1_fun.2} parent=0 // pred_fallthru
    _

</llo_original>
